<compile_context>
chip_gen: v7x
topology: tpu7x:2x2x1
jax: 0.10.0
libtpu: 0.0.40
codegen_flags: <defaults>
</compile_context>

<pallas_src>
import functools

import jax
import jax.numpy as jnp
from jax import lax
from jax.experimental import pallas as pl
from jax.experimental.pallas import tpu as pltpu

LANE = 128


def _round_up(n, m):
    return ((n + m - 1) // m) * m


# -----------------------------------------------------------------------------
# One-time parameter preparation (NOT in the per-step hot path).
# -----------------------------------------------------------------------------
def prepare_params(w_i2h, b_i2h, w_h2h, b_h2h, dtype=jnp.bfloat16):
    """Fuse / transpose / reorder / pad the PyTorch-layout parameters once.

    w_i2h: (4H, D), b_i2h: (4H,), w_h2h: (4H, H), b_h2h: (4H,).
    Gate columns are reordered from [i|f|g|o] to [i|f|o|g] and each gate block
    is zero-padded from H to Hp = round_up(H, 128) lanes.  Weights default to
    bf16 (MXU-native on v5e/v6e/v7x); bias and all gate math stay f32.
    """
    four_h, D = w_i2h.shape
    H = four_h // 4
    Hp = _round_up(H, LANE)

    def reorder_pad_cols(w_t):  # (K, 4H) -> (K, 4Hp), order [i,f,o,g]
        i, f, g, o = [w_t[:, k * H:(k + 1) * H] for k in range(4)]
        return jnp.concatenate(
            [jnp.pad(blk, ((0, 0), (0, Hp - H))) for blk in (i, f, o, g)], axis=1)

    wi_t = reorder_pad_cols(jnp.asarray(w_i2h, jnp.float32).T)      # (D, 4Hp)
    wh_t = reorder_pad_cols(jnp.asarray(w_h2h, jnp.float32).T)      # (H, 4Hp)
    wh_t = jnp.pad(wh_t, ((0, Hp - H), (0, 0)))                     # (Hp, 4Hp)

    b = jnp.asarray(b_i2h, jnp.float32) + jnp.asarray(b_h2h, jnp.float32)
    bi, bf, bg, bo = [b[k * H:(k + 1) * H] for k in range(4)]
    bias = jnp.concatenate(
        [jnp.pad(v, (0, Hp - H)) for v in (bi, bf, bo, bg)]).reshape(1, 4 * Hp)

    return dict(
        w_h=wh_t.astype(dtype),         # (Hp, 4Hp) recurrent weights (resident)
        w_i=wi_t.astype(dtype),         # (D, 4Hp)  input weights     (resident)
        bias=bias.astype(jnp.float32),  # (1, 4Hp)
        H=H, Hp=Hp, D=D,
    )


# -----------------------------------------------------------------------------
# Shared gate math (pre has gate order [i | f | o | g], all slices lane-aligned).
# -----------------------------------------------------------------------------
def _gate_math(pre, s, c_prev, Hp):
    sig = jax.nn.sigmoid(pre[:, :3 * Hp])      # one contiguous EUP pass (i,f,o)
    i_g = sig[:, 0 * Hp:1 * Hp]
    f_g = sig[:, 1 * Hp:2 * Hp]
    o_g = sig[:, 2 * Hp:3 * Hp]
    g = jnp.tanh(pre[:, 3 * Hp:])
    sb = jnp.broadcast_to(s, i_g.shape)        # broadcast sentiment once
    c_new = (f_g * (1.0 + sb)) * c_prev + (i_g * sb) * g
    h_new = o_g * jnp.tanh(c_new)
    return h_new, c_new


def _full_spec(shape):
    return pl.BlockSpec(shape, lambda *_: (0,) * len(shape))


# -----------------------------------------------------------------------------
# Single-step cell (faithful to the module's forward signature).
# -----------------------------------------------------------------------------
def _cell_kernel(x_ref, h_ref, c_ref, s_ref, wh_ref, wi_ref, b_ref,
                 h_out_ref, c_out_ref, *, H, Hp):
    wh = wh_ref[...]
    wi = wi_ref[...]
    # Two accumulating dots (no in-kernel concat -> no extra VMEM copy).
    pre = (jnp.dot(h_ref[...].astype(wh.dtype), wh,
                   preferred_element_type=jnp.float32)
           + jnp.dot(x_ref[...].astype(wi.dtype), wi,
                     preferred_element_type=jnp.float32)
           + b_ref[...])
    h_new, c_new = _gate_math(pre, s_ref[...], c_ref[...], Hp)
    h_out_ref[...] = h_new[:, :H].astype(h_out_ref.dtype)
    c_out_ref[...] = c_new[:, :H].astype(c_out_ref.dtype)


def sentiment_lstm_cell(x, h_prev, c_prev, sentiment, params):
    """One step of SentimentAwareLSTMCell. Returns (h, c), each (B, H)."""
    B, _ = x.shape
    H, Hp = params["H"], params["Hp"]
    w_h, w_i, bias = params["w_h"], params["w_i"], params["bias"]

    hp = jnp.pad(h_prev.astype(jnp.float32), ((0, 0), (0, Hp - H)))
    cp = jnp.pad(c_prev.astype(jnp.float32), ((0, 0), (0, Hp - H)))
    s = jnp.asarray(sentiment, jnp.float32).reshape(B, 1)

    kernel = functools.partial(_cell_kernel, H=H, Hp=Hp)
    h_new, c_new = pl.pallas_call(
        kernel,
        out_shape=(jax.ShapeDtypeStruct((B, H), jnp.float32),
                   jax.ShapeDtypeStruct((B, H), jnp.float32)),
        in_specs=[_full_spec(x.shape), _full_spec(hp.shape), _full_spec(cp.shape),
                  _full_spec(s.shape), _full_spec(w_h.shape),
                  _full_spec(w_i.shape), _full_spec(bias.shape)],
        out_specs=(_full_spec((B, H)), _full_spec((B, H))),
    )(x.astype(jnp.float32), hp, cp, s, w_h, w_i, bias)
    return h_new, c_new


# -----------------------------------------------------------------------------
# Full-sequence kernel: time axis blocked, recurrence unrolled inside the
# kernel, weights resident in VMEM, raw x streamed per time block.
# -----------------------------------------------------------------------------
def _seq_kernel(x_ref, s_ref, h0_ref, c0_ref, wh_ref, wi_ref, b_ref,
                hs_ref, hT_ref, cT_ref, h_sc, c_sc, *, H, Hp, T, T_BLK):
    blk_t = pl.program_id(1)

    @pl.when(blk_t == 0)
    def _():
        h_sc[...] = h0_ref[...]
        c_sc[...] = c0_ref[...]

    wh = wh_ref[...]                      # resident (constant index_map)
    wi = wi_ref[...]                      # resident
    b = b_ref[...]                        # resident
    divisible = (T % T_BLK == 0)          # static

    def step(lt, carry):
        t = blk_t * T_BLK + lt

        def do_step():
            x_t = x_ref[lt]               # (B_BLK, D)  streamed raw input
            s_t = s_ref[t]                # (B_BLK, 1)  resident sentiment
            pre = (jnp.dot(h_sc[...].astype(wh.dtype), wh,
                           preferred_element_type=jnp.float32)
                   + jnp.dot(x_t.astype(wi.dtype), wi,
                             preferred_element_type=jnp.float32)
                   + b)
            h_new, c_new = _gate_math(pre, s_t, c_sc[...], Hp)
            h_sc[...] = h_new
            c_sc[...] = c_new
            hs_ref[lt] = h_new[:, :H].astype(hs_ref.dtype)

        if divisible:
            do_step()
        else:
            pl.when(t < T)(do_step)       # guard padded tail steps
        return carry

    lax.fori_loop(0, T_BLK, step, 0, unroll=True)

    @pl.when(blk_t == pl.num_programs(1) - 1)
    def _():
        hT_ref[...] = h_sc[:, :H].astype(hT_ref.dtype)
        cT_ref[...] = c_sc[:, :H].astype(cT_ref.dtype)


def sentiment_lstm_sequence(xs, h0, c0, sentiments, params, *,
                            t_block=None, batch_block=None):
    """Run the cell over a whole sequence inside one pallas_call.

    xs: (T, B, D), sentiments: (T, B, 1) (or broadcastable), h0/c0: (B, H).
    Returns (hs: (T, B, H), (h_T, c_T)).

    t_block: time steps per grid iteration (amortizes per-grid-step overhead).
    batch_block: batch rows per grid block; set to B/2 (multiple of 8) on v7x
      to spread the batch across both TensorCores (the leading grid axis is
      marked "parallel").
    """
    T, B, D = xs.shape
    H, Hp = params["H"], params["Hp"]
    w_h, w_i, bias = params["w_h"], params["w_i"], params["bias"]
    G4 = 4 * Hp

    if t_block is None:
        # Small T: single grid step with everything resident; otherwise block
        # the time axis (per-grid-step overhead ~0.35 us vs. tiny per-step work).
        t_block = T if T <= 32 else 16
    T_BLK = max(1, min(t_block, T))
    nt = pl.cdiv(T, T_BLK)

    if batch_block is None:
        batch_block = B
    assert B % batch_block == 0, "batch_block must divide B"
    assert batch_block == B or batch_block % 8 == 0, \
        "batch_block must be a multiple of 8 (sublanes) or equal B"
    B_BLK = batch_block
    nb = B // B_BLK

    xs = xs.astype(jnp.float32)
    s = jnp.broadcast_to(jnp.asarray(sentiments, jnp.float32).reshape(T, B, -1)[..., :1],
                         (T, B, 1))
    h0p = jnp.pad(h0.astype(jnp.float32), ((0, 0), (0, Hp - H)))
    c0p = jnp.pad(c0.astype(jnp.float32), ((0, 0), (0, Hp - H)))

    kernel = functools.partial(_seq_kernel, H=H, Hp=Hp, T=T, T_BLK=T_BLK)
    # NOTE: for large H on v7x (64 MiB VMEM), use bf16 weights (default), set
    # pltpu.CompilerParams(vmem_limit_bytes=...) explicitly and consider
    # pipeline_mode=pl.Buffered(1) on the constant-index resident specs so they
    # are not double-buffered. Not needed at these sizes.
    hs, hT, cT = pl.pallas_call(
        kernel,
        out_shape=(jax.ShapeDtypeStruct((T, B, H), jnp.float32),
                   jax.ShapeDtypeStruct((B, H), jnp.float32),
                   jax.ShapeDtypeStruct((B, H), jnp.float32)),
        grid=(nb, nt),
        in_specs=[
            pl.BlockSpec((T_BLK, B_BLK, D), lambda bi, ti: (ti, bi, 0)),  # raw x
            pl.BlockSpec((T, B_BLK, 1), lambda bi, ti: (0, bi, 0)),       # sentiment
            pl.BlockSpec((B_BLK, Hp), lambda bi, ti: (bi, 0)),            # h0
            pl.BlockSpec((B_BLK, Hp), lambda bi, ti: (bi, 0)),            # c0
            pl.BlockSpec((Hp, G4), lambda bi, ti: (0, 0)),                # W_h2h
            pl.BlockSpec((D, G4), lambda bi, ti: (0, 0)),                 # W_i2h
            pl.BlockSpec((1, G4), lambda bi, ti: (0, 0)),                 # bias
        ],
        out_specs=(pl.BlockSpec((T_BLK, B_BLK, H), lambda bi, ti: (ti, bi, 0)),
                   pl.BlockSpec((B_BLK, H), lambda bi, ti: (bi, 0)),
                   pl.BlockSpec((B_BLK, H), lambda bi, ti: (bi, 0))),
        scratch_shapes=[pltpu.VMEM((B_BLK, Hp), jnp.float32),   # h carry
                        pltpu.VMEM((B_BLK, Hp), jnp.float32)],  # c carry
        compiler_params=pltpu.CompilerParams(
            dimension_semantics=("parallel", "arbitrary")),
    )(xs, s, h0p, c0p, w_h, w_i, bias)

    return hs, (hT, cT)


# -----------------------------------------------------------------------------
# Pure-JAX references.
# -----------------------------------------------------------------------------
def _reference_cell(x, h_prev, c_prev, s, w_i2h, b_i2h, w_h2h, b_h2h):
    pre = x @ w_i2h.T + b_i2h + h_prev @ w_h2h.T + b_h2h
    i, f, g, o = jnp.split(pre, 4, axis=-1)
    f = jax.nn.sigmoid(f) * (1.0 + s)
    i = jax.nn.sigmoid(i) * s
    o = jax.nn.sigmoid(o)
    c = f * c_prev + i * jnp.tanh(g)
    h = o * jnp.tanh(c)
    return h, c


def _reference_sequence(xs, h0, c0, ss, w_i2h, b_i2h, w_h2h, b_h2h):
    def step(carry, inp):
        h, c = carry
        x, s = inp
        h, c = _reference_cell(x, h, c, s, w_i2h, b_i2h, w_h2h, b_h2h)
        return (h, c), h

    (hT, cT), hs = lax.scan(step, (h0, c0), (xs, ss))
    return hs, (hT, cT)


if __name__ == "__main__":
    B, D, H, T = 8, 32, 32, 8   # batch, input_size, hidden_size, seq_len

    key = jax.random.PRNGKey(0)
    k = jax.random.split(key, 10)
    x = jax.random.normal(k[0], (B, D), jnp.float32)
    h0 = jax.random.normal(k[1], (B, H), jnp.float32)
    c0 = jax.random.normal(k[2], (B, H), jnp.float32)
    sentiment = jax.random.uniform(k[3], (B, 1), jnp.float32)

    bi_s = 1.0 / jnp.sqrt(jnp.float32(D))
    bh_s = 1.0 / jnp.sqrt(jnp.float32(H))
    w_i2h = jax.random.uniform(k[4], (4 * H, D), jnp.float32, -bi_s, bi_s)
    b_i2h = jax.random.uniform(k[5], (4 * H,), jnp.float32, -bi_s, bi_s)
    w_h2h = jax.random.uniform(k[6], (4 * H, H), jnp.float32, -bh_s, bh_s)
    b_h2h = jax.random.uniform(k[7], (4 * H,), jnp.float32, -bh_s, bh_s)

    params_f32 = prepare_params(w_i2h, b_i2h, w_h2h, b_h2h, dtype=jnp.float32)
    params_bf16 = prepare_params(w_i2h, b_i2h, w_h2h, b_h2h)   # bf16 (default)

    # --- single-step cell (matches the module's forward) ---
    h1, c1 = sentiment_lstm_cell(x, h0, c0, sentiment, params_f32)
    jax.block_until_ready((h1, c1))
    h1_ref, c1_ref = _reference_cell(x, h0, c0, sentiment,
                                     w_i2h, b_i2h, w_h2h, b_h2h)
    assert jnp.allclose(h1, h1_ref, atol=1e-4, rtol=1e-4)
    assert jnp.allclose(c1, c1_ref, atol=1e-4, rtol=1e-4)

    # --- full sequence, recurrence blocked/unrolled inside one kernel ---
    xs = jax.random.normal(k[8], (T, B, D), jnp.float32)
    ss = jax.random.uniform(k[9], (T, B, 1), jnp.float32)
    hs_ref, (hT_ref, cT_ref) = _reference_sequence(xs, h0, c0, ss,
                                                   w_i2h, b_i2h, w_h2h, b_h2h)

    hs, (hT, cT) = sentiment_lstm_sequence(xs, h0, c0, ss, params_f32)
    jax.block_until_ready((hs, hT, cT))
    assert jnp.allclose(hs, hs_ref, atol=1e-4, rtol=1e-4)
    assert jnp.allclose(hT, hT_ref, atol=1e-4, rtol=1e-4)
    assert jnp.allclose(cT, cT_ref, atol=1e-4, rtol=1e-4)

    # bf16 weights (MXU-native on v5e/v6e/v7x); accumulation + gate math are f32,
    # so tolerance only loosens to ~1e-2 relative.
    hs16, (hT16, cT16) = sentiment_lstm_sequence(xs, h0, c0, ss, params_bf16)
    jax.block_until_ready((hs16, hT16, cT16))
    assert jnp.allclose(hs16, hs_ref, atol=5e-2, rtol=5e-2)
    assert jnp.allclose(hT16, hT_ref, atol=5e-2, rtol=5e-2)
    assert jnp.allclose(cT16, cT_ref, atol=5e-2, rtol=5e-2)

    print("KERNEL_OK")
</pallas_src>

<mosaic_0001>
module attributes {stable_mosaic.version = 11 : i64} {
  func.func @_cell_kernel(%arg0: memref<8x32xf32, #tpu.memory_space<vmem>>, %arg1: memref<8x128xf32, #tpu.memory_space<vmem>>, %arg2: memref<8x128xf32, #tpu.memory_space<vmem>>, %arg3: memref<8x1xf32, #tpu.memory_space<vmem>>, %arg4: memref<128x512xf32, #tpu.memory_space<vmem>>, %arg5: memref<32x512xf32, #tpu.memory_space<vmem>>, %arg6: memref<1x512xf32, #tpu.memory_space<vmem>>, %arg7: memref<8x32xf32, #tpu.memory_space<vmem>>, %arg8: memref<8x32xf32, #tpu.memory_space<vmem>>) attributes {dimension_semantics = [], scalar_prefetch = 0 : i64, scratch_operands = 0 : i64, tpu.core_type = #tpu.core_type<tc>} {
    %c0 = arith.constant 0 : index
    %c0_0 = arith.constant 0 : index
    %0 = vector.load %arg4[%c0, %c0_0] : memref<128x512xf32, #tpu.memory_space<vmem>>, vector<128x512xf32>
    %c0_1 = arith.constant 0 : index
    %c0_2 = arith.constant 0 : index
    %1 = vector.load %arg5[%c0_1, %c0_2] : memref<32x512xf32, #tpu.memory_space<vmem>>, vector<32x512xf32>
    %c0_3 = arith.constant 0 : index
    %c0_4 = arith.constant 0 : index
    %2 = vector.load %arg1[%c0_3, %c0_4] : memref<8x128xf32, #tpu.memory_space<vmem>>, vector<8x128xf32>
    %cst = arith.constant dense<0.000000e+00> : vector<8x512xf32>
    %3 = tpu.matmul %2, %0, %cst {dimension_numbers = #tpu.dot_dimension_numbers<[1], [0], [0], [1], [0, 0, 1, 1], [], []>} : vector<8x128xf32>, vector<128x512xf32>, vector<8x512xf32> -> vector<8x512xf32>
    %c0_5 = arith.constant 0 : index
    %c0_6 = arith.constant 0 : index
    %4 = vector.load %arg0[%c0_5, %c0_6] : memref<8x32xf32, #tpu.memory_space<vmem>>, vector<8x32xf32>
    %cst_7 = arith.constant dense<0.000000e+00> : vector<8x512xf32>
    %5 = tpu.matmul %4, %1, %cst_7 {dimension_numbers = #tpu.dot_dimension_numbers<[1], [0], [0], [1], [0, 0, 1, 1], [], []>} : vector<8x32xf32>, vector<32x512xf32>, vector<8x512xf32> -> vector<8x512xf32>
    %6 = arith.addf %3, %5 : vector<8x512xf32>
    %c0_8 = arith.constant 0 : index
    %c0_9 = arith.constant 0 : index
    %7 = vector.load %arg6[%c0_8, %c0_9] : memref<1x512xf32, #tpu.memory_space<vmem>>, vector<1x512xf32>
    %8 = vector.broadcast %7 : vector<1x512xf32> to vector<8x512xf32>
    %9 = arith.addf %6, %8 : vector<8x512xf32>
    %c0_10 = arith.constant 0 : index
    %c0_11 = arith.constant 0 : index
    %10 = vector.load %arg3[%c0_10, %c0_11] : memref<8x1xf32, #tpu.memory_space<vmem>>, vector<8x1xf32>
    %c0_12 = arith.constant 0 : index
    %c0_13 = arith.constant 0 : index
    %11 = vector.load %arg2[%c0_12, %c0_13] : memref<8x128xf32, #tpu.memory_space<vmem>>, vector<8x128xf32>
    %12 = vector.extract_strided_slice %9 {offsets = [0, 0], sizes = [8, 384], strides = [1, 1]} : vector<8x512xf32> to vector<8x384xf32>
    %13 = arith.negf %12 : vector<8x384xf32>
    %14 = math.exp %13 : vector<8x384xf32>
    %cst_14 = arith.constant 1.000000e+00 : f32
    %15 = vector.broadcast %cst_14 : f32 to vector<8x384xf32>
    %16 = arith.addf %15, %14 : vector<8x384xf32>
    %17 = arith.divf %15, %16 : vector<8x384xf32>
    %18 = vector.extract_strided_slice %17 {offsets = [0, 0], sizes = [8, 128], strides = [1, 1]} : vector<8x384xf32> to vector<8x128xf32>
    %19 = vector.extract_strided_slice %17 {offsets = [0, 128], sizes = [8, 128], strides = [1, 1]} : vector<8x384xf32> to vector<8x128xf32>
    %20 = vector.extract_strided_slice %17 {offsets = [0, 256], sizes = [8, 128], strides = [1, 1]} : vector<8x384xf32> to vector<8x128xf32>
    %21 = vector.extract_strided_slice %9 {offsets = [0, 384], sizes = [8, 128], strides = [1, 1]} : vector<8x512xf32> to vector<8x128xf32>
    %22 = math.tanh %21 : vector<8x128xf32>
    %23 = vector.shape_cast %10 : vector<8x1xf32> to vector<8x1xf32>
    %24 = vector.broadcast %23 : vector<8x1xf32> to vector<8x128xf32>
    %cst_15 = arith.constant 1.000000e+00 : f32
    %25 = vector.broadcast %cst_15 : f32 to vector<8x128xf32>
    %26 = arith.addf %25, %24 : vector<8x128xf32>
    %27 = arith.mulf %19, %26 : vector<8x128xf32>
    %28 = arith.mulf %27, %11 : vector<8x128xf32>
    %29 = arith.mulf %18, %24 : vector<8x128xf32>
    %30 = arith.mulf %29, %22 : vector<8x128xf32>
    %31 = arith.addf %28, %30 : vector<8x128xf32>
    %32 = math.tanh %31 : vector<8x128xf32>
    %33 = arith.mulf %20, %32 : vector<8x128xf32>
    %34 = vector.extract_strided_slice %33 {offsets = [0, 0], sizes = [8, 32], strides = [1, 1]} : vector<8x128xf32> to vector<8x32xf32>
    %c0_16 = arith.constant 0 : index
    %c0_17 = arith.constant 0 : index
    %35 = vector.load %arg7[%c0_16, %c0_17] : memref<8x32xf32, #tpu.memory_space<vmem>>, vector<8x32xf32>
    tpu.vector_store %arg7[%c0_16, %c0_17], %34 {strides = array<i32>} : memref<8x32xf32, #tpu.memory_space<vmem>>, vector<8x32xf32>,
    %36 = vector.extract_strided_slice %31 {offsets = [0, 0], sizes = [8, 32], strides = [1, 1]} : vector<8x128xf32> to vector<8x32xf32>
    %c0_18 = arith.constant 0 : index
    %c0_19 = arith.constant 0 : index
    %37 = vector.load %arg8[%c0_18, %c0_19] : memref<8x32xf32, #tpu.memory_space<vmem>>, vector<8x32xf32>
    tpu.vector_store %arg8[%c0_18, %c0_19], %36 {strides = array<i32>} : memref<8x32xf32, #tpu.memory_space<vmem>>, vector<8x32xf32>,
    return
  }
}

</mosaic_0001>

<llo_original>
// kernel: tpu_custom_call.1
$region0: #{tpu_custom_call.1}
  #allocation0 [shape = 'u32[]', space=smem, size = 0x4, offset = 0x4, fixed_abs, tag = 'smem constant byte address 0x4 - core index']
  #allocation1 [shape = 'u32[144,128]{1,0:T(1,128)}', space=vmem, size = 0x12000, scoped, tag = 'internal scratch']
  %s0 = inlined_call_operand.vmem [shape: f32[8,32], index: 0, kind: input, shape index: {}]
  %s1 = inlined_call_operand.hbm [shape: f32[8,128], index: 1, kind: input, shape index: {}]
  %s2 = inlined_call_operand.vmem [shape: f32[8,128], index: 2, kind: input, shape index: {}]
  %s3 = inlined_call_operand.vmem [shape: f32[8,1], index: 3, kind: input, shape index: {}]
  %s4 = inlined_call_operand.hbm [shape: f32[128,512], index: 4, kind: input, shape index: {}]
  %s5 = inlined_call_operand.hbm [shape: f32[32,512], index: 5, kind: input, shape index: {}]
  %s6 = inlined_call_operand.vmem [shape: f32[1,512], index: 6, kind: input, shape index: {}]
  %s7 = inlined_call_operand.hbm [shape: f32[8,32], index: 7, kind: output, shape index: {0}]
  %s8 = inlined_call_operand.hbm [shape: f32[8,32], index: 8, kind: output, shape index: {1}]
  %9 = xla_tuple %s7, %s8
  %s10 = sld [smem:[#allocation0]]
  $region58: #{tpu_custom_call.1} parent=0
    _
  %s12 = ssub.s32 1, %s10
  %s13 = scalar_select 0, %s12, %s10
  $region1: #{tpu_custom_call.1} parent=0
    #allocation2 [shape = 'u8[4096]{0}', space=vmem, size = 0x1000, scoped, tag = 'input window, operand 1, single buffered']
    #allocation3 [shape = 's32[1]{0}', space=sflag, size = 0x4, scoped, tag = 'scoped memory for tpu_custom_call.1']
    #allocation4 [shape = 's32[1]{0}', space=sflag, size = 0x4, scoped, tag = 'scoped memory for tpu_custom_call.1']
    #allocation5 [shape = 'u8[262144]{0}', space=vmem, size = 0x40000, scoped, tag = 'input window, operand 4, single buffered']
    #allocation6 [shape = 's32[1]{0}', space=sflag, size = 0x4, scoped, tag = 'scoped memory for tpu_custom_call.1']
    #allocation7 [shape = 'u8[65536]{0}', space=vmem, size = 0x10000, scoped, tag = 'input window, operand 5, single buffered']
    #allocation8 [shape = 'u8[4096]{0}', space=vmem, size = 0x1000, scoped, tag = 'output window, operand 0, single buffered']
    #allocation9 [shape = 'u8[4096]{0}', space=vmem, size = 0x1000, scoped, tag = 'output window, operand 1, single buffered']
    #allocation10 [shape = 's32[1]{0}', space=sflag, size = 0x4, scoped, tag = 'scoped memory for tpu_custom_call.1']
    %14 = vsyncpa [#allocation3], 0
    %15 = vsyncpa [#allocation6], 0
    %16 = vsyncpa [#allocation4], 0
    %17 = vsyncpa [#allocation10], 0
    // Predicated region
    $region2: #{tpu_custom_call.1} parent=1 // pred_check
      _
    $region3: #{tpu_custom_call.1} parent=1 // pred_check_branch
      %19 = sbr.rel (0) target = $region5
    $region4: #{tpu_custom_call.1} parent=1 // pred_region
      _
    $region5: #{tpu_custom_call.1} parent=1 // pred_fallthru
      _
    // Predicated region
    $region6: #{tpu_custom_call.1} parent=1 // pred_check
      _
    $region7: #{tpu_custom_call.1} parent=1 // pred_check_branch
      %21 = sbr.rel (0) target = $region9
    $region8: #{tpu_custom_call.1} parent=1 // pred_region
      %s23 = ssub.s32 128, 128
      %24 = vsyncadd [#allocation3], %s23
      %s26 = sshll.u32 [#allocation2], 4
      %s27 = int_to_ptr.vmem [resolvable:$true] %s26
      %29 = dma.hbm_to_vmem [thread:$0]  %s1, 128, %s27, [#allocation3]
    $region9: #{tpu_custom_call.1} parent=1 // pred_fallthru
      _
    // Predicated region
    $region10: #{tpu_custom_call.1} parent=1 // pred_check
      _
    $region11: #{tpu_custom_call.1} parent=1 // pred_check_branch
      %31 = sbr.rel (0) target = $region13
    $region12: #{tpu_custom_call.1} parent=1 // pred_region
      _
    $region13: #{tpu_custom_call.1} parent=1 // pred_fallthru
      _
    // Predicated region
    $region14: #{tpu_custom_call.1} parent=1 // pred_check
      _
    $region15: #{tpu_custom_call.1} parent=1 // pred_check_branch
      %33 = sbr.rel (0) target = $region17
    $region16: #{tpu_custom_call.1} parent=1 // pred_region
      _
    $region17: #{tpu_custom_call.1} parent=1 // pred_fallthru
      _
    // Predicated region
    $region18: #{tpu_custom_call.1} parent=1 // pred_check
      _
    $region19: #{tpu_custom_call.1} parent=1 // pred_check_branch
      %35 = sbr.rel (0) target = $region21
    $region20: #{tpu_custom_call.1} parent=1 // pred_region
      %s37 = ssub.s32 8192, 8192
      %38 = vsyncadd [#allocation6], %s37
      %s39 = sshll.u32 [#allocation5], 4
      %s40 = int_to_ptr.vmem [resolvable:$true] %s39
      %45 = dma.hbm_to_vmem [thread:$0]  %s4, 8192, %s40, [#allocation6], 512, 512, 32
    $region21: #{tpu_custom_call.1} parent=1 // pred_fallthru
      _
    // Predicated region
    $region22: #{tpu_custom_call.1} parent=1 // pred_check
      _
    $region23: #{tpu_custom_call.1} parent=1 // pred_check_branch
      %47 = sbr.rel (0) target = $region25
    $region24: #{tpu_custom_call.1} parent=1 // pred_region
      %s49 = ssub.s32 2048, 2048
      %50 = vsyncadd [#allocation6], %s49
      %s51 = sshll.u32 [#allocation7], 4
      %s52 = int_to_ptr.vmem [resolvable:$true] %s51
      %57 = dma.hbm_to_vmem [thread:$0]  %s5, 2048, %s52, [#allocation6], 512, 512, 32
    $region25: #{tpu_custom_call.1} parent=1 // pred_fallthru
      _
    // Predicated region
    $region26: #{tpu_custom_call.1} parent=1 // pred_check
      _
    $region27: #{tpu_custom_call.1} parent=1 // pred_check_branch
      %59 = sbr.rel (0) target = $region29
    $region28: #{tpu_custom_call.1} parent=1 // pred_region
      _
    $region29: #{tpu_custom_call.1} parent=1 // pred_fallthru
      _
    // Predicated region
    $region30: #{tpu_custom_call.1} parent=1 // pred_check
      _
    $region31: #{tpu_custom_call.1} parent=1 // pred_check_branch
      %61 = sbr.rel (0) target = $region33
    $region32: #{tpu_custom_call.1} parent=1 // pred_region
      %62 = dma.done [#allocation3], 128
    $region33: #{tpu_custom_call.1} parent=1 // pred_fallthru
      _
    // Predicated region
    $region34: #{tpu_custom_call.1} parent=1 // pred_check
      _
    $region35: #{tpu_custom_call.1} parent=1 // pred_check_branch
      %64 = sbr.rel (0) target = $region37
    $region36: #{tpu_custom_call.1} parent=1 // pred_region
      %65 = dma.done [#allocation6], 8192
    $region37: #{tpu_custom_call.1} parent=1 // pred_fallthru
      _
    // Predicated region
    $region38: #{tpu_custom_call.1} parent=1 // pred_check
      _
    $region39: #{tpu_custom_call.1} parent=1 // pred_check_branch
      %67 = sbr.rel (0) target = $region41
    $region40: #{tpu_custom_call.1} parent=1 // pred_region
      %68 = dma.done [#allocation6], 2048
    $region41: #{tpu_custom_call.1} parent=1 // pred_fallthru
      _
    %v69 = vld [vmem:[#allocation5] sm:$0xff]
    %v70 = vld [vmem:[#allocation5 + $0x8] sm:$0xff]
    %v71 = vld [vmem:[#allocation5 + $0x10] sm:$0xff]
    %v72 = vld [vmem:[#allocation5 + $0x18] sm:$0xff]
    %v73 = vld [vmem:[#allocation5 + $0x20] sm:$0xff]
    %v74 = vld [vmem:[#allocation5 + $0x28] sm:$0xff]
    %v75 = vld [vmem:[#allocation5 + $0x30] sm:$0xff]
    %v76 = vld [vmem:[#allocation5 + $0x38] sm:$0xff]
    %v77 = vld [vmem:[#allocation5 + $0x40] sm:$0xff]
    %v78 = vld [vmem:[#allocation5 + $0x48] sm:$0xff]
    %v79 = vld [vmem:[#allocation5 + $0x50] sm:$0xff]
    %v80 = vld [vmem:[#allocation5 + $0x58] sm:$0xff]
    %v81 = vld [vmem:[#allocation5 + $0x60] sm:$0xff]
    %v82 = vld [vmem:[#allocation5 + $0x68] sm:$0xff]
    %v83 = vld [vmem:[#allocation5 + $0x70] sm:$0xff]
    %v84 = vld [vmem:[#allocation5 + $0x78] sm:$0xff]
    %v85 = vld [vmem:[#allocation5 + $0x80] sm:$0xff]
    %v86 = vld [vmem:[#allocation5 + $0x88] sm:$0xff]
    %v87 = vld [vmem:[#allocation5 + $0x90] sm:$0xff]
    %v88 = vld [vmem:[#allocation5 + $0x98] sm:$0xff]
    %v89 = vld [vmem:[#allocation5 + $0xa0] sm:$0xff]
    %v90 = vld [vmem:[#allocation5 + $0xa8] sm:$0xff]
    %v91 = vld [vmem:[#allocation5 + $0xb0] sm:$0xff]
    %v92 = vld [vmem:[#allocation5 + $0xb8] sm:$0xff]
    %v93 = vld [vmem:[#allocation5 + $0xc0] sm:$0xff]
    %v94 = vld [vmem:[#allocation5 + $0xc8] sm:$0xff]
    %v95 = vld [vmem:[#allocation5 + $0xd0] sm:$0xff]
    %v96 = vld [vmem:[#allocation5 + $0xd8] sm:$0xff]
    %v97 = vld [vmem:[#allocation5 + $0xe0] sm:$0xff]
    %v98 = vld [vmem:[#allocation5 + $0xe8] sm:$0xff]
    %v99 = vld [vmem:[#allocation5 + $0xf0] sm:$0xff]
    %v100 = vld [vmem:[#allocation5 + $0xf8] sm:$0xff]
    %v101 = vld [vmem:[#allocation5 + $0x100] sm:$0xff]
    %v102 = vld [vmem:[#allocation5 + $0x108] sm:$0xff]
    %v103 = vld [vmem:[#allocation5 + $0x110] sm:$0xff]
    %v104 = vld [vmem:[#allocation5 + $0x118] sm:$0xff]
    %v105 = vld [vmem:[#allocation5 + $0x120] sm:$0xff]
    %v106 = vld [vmem:[#allocation5 + $0x128] sm:$0xff]
    %v107 = vld [vmem:[#allocation5 + $0x130] sm:$0xff]
    %v108 = vld [vmem:[#allocation5 + $0x138] sm:$0xff]
    %v109 = vld [vmem:[#allocation5 + $0x140] sm:$0xff]
    %v110 = vld [vmem:[#allocation5 + $0x148] sm:$0xff]
    %v111 = vld [vmem:[#allocation5 + $0x150] sm:$0xff]
    %v112 = vld [vmem:[#allocation5 + $0x158] sm:$0xff]
    %v113 = vld [vmem:[#allocation5 + $0x160] sm:$0xff]
    %v114 = vld [vmem:[#allocation5 + $0x168] sm:$0xff]
    %v115 = vld [vmem:[#allocation5 + $0x170] sm:$0xff]
    %v116 = vld [vmem:[#allocation5 + $0x178] sm:$0xff]
    %v117 = vld [vmem:[#allocation5 + $0x180] sm:$0xff]
    %v118 = vld [vmem:[#allocation5 + $0x188] sm:$0xff]
    %v119 = vld [vmem:[#allocation5 + $0x190] sm:$0xff]
    %v120 = vld [vmem:[#allocation5 + $0x198] sm:$0xff]
    %v121 = vld [vmem:[#allocation5 + $0x1a0] sm:$0xff]
    %v122 = vld [vmem:[#allocation5 + $0x1a8] sm:$0xff]
    %v123 = vld [vmem:[#allocation5 + $0x1b0] sm:$0xff]
    %v124 = vld [vmem:[#allocation5 + $0x1b8] sm:$0xff]
    %v125 = vld [vmem:[#allocation5 + $0x1c0] sm:$0xff]
    %v126 = vld [vmem:[#allocation5 + $0x1c8] sm:$0xff]
    %v127 = vld [vmem:[#allocation5 + $0x1d0] sm:$0xff]
    %v128 = vld [vmem:[#allocation5 + $0x1d8] sm:$0xff]
    %v129 = vld [vmem:[#allocation5 + $0x1e0] sm:$0xff]
    %v130 = vld [vmem:[#allocation5 + $0x1e8] sm:$0xff]
    %v131 = vld [vmem:[#allocation5 + $0x1f0] sm:$0xff]
    %v132 = vld [vmem:[#allocation5 + $0x1f8] sm:$0xff]
    %v133 = vld [vmem:[#allocation7] sm:$0xff]
    %v134 = vld [vmem:[#allocation7 + $0x8] sm:$0xff]
    %v135 = vld [vmem:[#allocation7 + $0x10] sm:$0xff]
    %v136 = vld [vmem:[#allocation7 + $0x18] sm:$0xff]
    %v137 = vld [vmem:[#allocation7 + $0x20] sm:$0xff]
    %v138 = vld [vmem:[#allocation7 + $0x28] sm:$0xff]
    %v139 = vld [vmem:[#allocation7 + $0x30] sm:$0xff]
    %v140 = vld [vmem:[#allocation7 + $0x38] sm:$0xff]
    %v141 = vld [vmem:[#allocation7 + $0x40] sm:$0xff]
    %v142 = vld [vmem:[#allocation7 + $0x48] sm:$0xff]
    %v143 = vld [vmem:[#allocation7 + $0x50] sm:$0xff]
    %v144 = vld [vmem:[#allocation7 + $0x58] sm:$0xff]
    %v145 = vld [vmem:[#allocation7 + $0x60] sm:$0xff]
    %v146 = vld [vmem:[#allocation7 + $0x68] sm:$0xff]
    %v147 = vld [vmem:[#allocation7 + $0x70] sm:$0xff]
    %v148 = vld [vmem:[#allocation7 + $0x78] sm:$0xff]
    %v149 = vld [vmem:[#allocation2] sm:$0xff]
    %v150 = vld [vmem:[%s0] sm:$0xff]
    %vm151 = vcmask 261120
    %v153 = vsel %vm151, %v150, 0
    %155 = vmatprep.subr.mxu0 %v134
    %156 = vmatpush1.msra.mxu0 %v133
    %157 = vmatprep.subr.mxu0 %v138
    %158 = vmatpush1.msra.mxu0 %v137
    %159 = vmatprep.subr.mxu0 %v142
    %160 = vmatpush1.msra.mxu0 %v141
    %161 = vmatprep.subr.mxu0 %v146
    %162 = vmatpush1.msra.mxu0 %v145
    %163 = vmatprep.subr.mxu0 0.0
    %164 = vmatpush1.msra.mxu0 0.0
    %165 = vmatprep.subr.mxu0 0.0
    %166 = vmatpush1.msra.mxu0 0.0
    %167 = vmatprep.subr.mxu0 0.0
    %168 = vmatpush1.msra.mxu0 0.0
    %169 = vmatprep.subr.mxu0 0.0
    %170 = vmatpush1.msra.mxu0 0.0
    %171 = vmatprep.subr.mxu0 0.0
    %172 = vmatpush1.msra.mxu0 0.0
    %173 = vmatprep.subr.mxu0 0.0
    %174 = vmatpush1.msra.mxu0 0.0
    %175 = vmatprep.subr.mxu0 0.0
    %176 = vmatpush1.msra.mxu0 0.0
    %177 = vmatprep.subr.mxu0 0.0
    %178 = vmatpush1.msra.mxu0 0.0
    %179 = vmatprep.subr.mxu0 0.0
    %180 = vmatpush1.msra.mxu0 0.0
    %181 = vmatprep.subr.mxu0 0.0
    %182 = vmatpush1.msra.mxu0 0.0
    %183 = vmatprep.subr.mxu0 0.0
    %184 = vmatpush1.msra.mxu0 0.0
    %185 = vmatprep.subr.mxu0 0.0
    %186 = vmatpush1.msra.mxu0 0.0
    %187 = vmatprep.subr.mxu0 0.0
    %188 = vmatpush1.msra.mxu0 0.0
    %189 = vmatprep.subr.mxu0 0.0
    %190 = vmatpush1.msra.mxu0 0.0
    %191 = vmatprep.subr.mxu0 0.0
    %192 = vmatpush1.msra.mxu0 0.0
    %193 = vmatprep.subr.mxu0 0.0
    %194 = vmatpush1.msra.mxu0 0.0
    %195 = vmatprep.subr.mxu0 0.0
    %196 = vmatpush1.msra.mxu0 0.0
    %197 = vmatprep.subr.mxu0 0.0
    %198 = vmatpush1.msra.mxu0 0.0
    %199 = vmatprep.subr.mxu0 0.0
    %200 = vmatpush1.msra.mxu0 0.0
    %201 = vmatprep.subr.mxu0 0.0
    %202 = vmatpush1.msra.mxu0 0.0
    %203 = vmatprep.subr.mxu0 0.0
    %204 = vmatpush1.msra.mxu0 0.0
    %205 = vmatprep.subr.mxu0 0.0
    %206 = vmatpush1.msra.mxu0 0.0
    %207 = vmatprep.subr.mxu0 0.0
    %208 = vmatpush1.msra.mxu0 0.0
    %209 = vmatprep.subr.mxu0 0.0
    %210 = vmatpush1.msra.mxu0 0.0
    %211 = vmatprep.subr.mxu0 0.0
    %212 = vmatpush1.msra.mxu0 0.0
    %213 = vmatprep.subr.mxu0 0.0
    %214 = vmatpush1.msra.mxu0 0.0
    %215 = vmatprep.subr.mxu0 0.0
    %216 = vmatpush1.msra.mxu0 0.0
    %217 = vmatprep.subr.mxu0 0.0
    %218 = vmatpush1.msra.mxu0 0.0
    %219 = vmatprep.mubr.f32.mxu0 0.0
    %220 = vmatmul.mubr.f32.gmra.mrb[0].mxu0 %v153
    %v221 = vpop.f32.mrb[0].mxu0
    %v222 = vadd.f32 0.0, %v221
    %v223 = vpop.f32.mrb[0].mxu0
    %v224 = vadd.f32 0.0, %v223
    %225 = vdwg.mxu0
    %226 = vmatprep.subr.mxu0 %v136
    %227 = vmatpush1.msra.mxu0 %v135
    %228 = vmatprep.subr.mxu0 %v140
    %229 = vmatpush1.msra.mxu0 %v139
    %230 = vmatprep.subr.mxu0 %v144
    %231 = vmatpush1.msra.mxu0 %v143
    %232 = vmatprep.subr.mxu0 %v148
    %233 = vmatpush1.msra.mxu0 %v147
    %234 = vmatprep.subr.mxu0 0.0
    %235 = vmatpush1.msra.mxu0 0.0
    %236 = vmatprep.subr.mxu0 0.0
    %237 = vmatpush1.msra.mxu0 0.0
    %238 = vmatprep.subr.mxu0 0.0
    %239 = vmatpush1.msra.mxu0 0.0
    %240 = vmatprep.subr.mxu0 0.0
    %241 = vmatpush1.msra.mxu0 0.0
    %242 = vmatprep.subr.mxu0 0.0
    %243 = vmatpush1.msra.mxu0 0.0
    %244 = vmatprep.subr.mxu0 0.0
    %245 = vmatpush1.msra.mxu0 0.0
    %246 = vmatprep.subr.mxu0 0.0
    %247 = vmatpush1.msra.mxu0 0.0
    %248 = vmatprep.subr.mxu0 0.0
    %249 = vmatpush1.msra.mxu0 0.0
    %250 = vmatprep.subr.mxu0 0.0
    %251 = vmatpush1.msra.mxu0 0.0
    %252 = vmatprep.subr.mxu0 0.0
    %253 = vmatpush1.msra.mxu0 0.0
    %254 = vmatprep.subr.mxu0 0.0
    %255 = vmatpush1.msra.mxu0 0.0
    %256 = vmatprep.subr.mxu0 0.0
    %257 = vmatpush1.msra.mxu0 0.0
    %258 = vmatprep.subr.mxu0 0.0
    %259 = vmatpush1.msra.mxu0 0.0
    %260 = vmatprep.subr.mxu0 0.0
    %261 = vmatpush1.msra.mxu0 0.0
    %262 = vmatprep.subr.mxu0 0.0
    %263 = vmatpush1.msra.mxu0 0.0
    %264 = vmatprep.subr.mxu0 0.0
    %265 = vmatpush1.msra.mxu0 0.0
    %266 = vmatprep.subr.mxu0 0.0
    %267 = vmatpush1.msra.mxu0 0.0
    %268 = vmatprep.subr.mxu0 0.0
    %269 = vmatpush1.msra.mxu0 0.0
    %270 = vmatprep.subr.mxu0 0.0
    %271 = vmatpush1.msra.mxu0 0.0
    %272 = vmatprep.subr.mxu0 0.0
    %273 = vmatpush1.msra.mxu0 0.0
    %274 = vmatprep.subr.mxu0 0.0
    %275 = vmatpush1.msra.mxu0 0.0
    %276 = vmatprep.subr.mxu0 0.0
    %277 = vmatpush1.msra.mxu0 0.0
    %278 = vmatprep.subr.mxu0 0.0
    %279 = vmatpush1.msra.mxu0 0.0
    %280 = vmatprep.subr.mxu0 0.0
    %281 = vmatpush1.msra.mxu0 0.0
    %282 = vmatprep.subr.mxu0 0.0
    %283 = vmatpush1.msra.mxu0 0.0
    %284 = vmatprep.subr.mxu0 0.0
    %285 = vmatpush1.msra.mxu0 0.0
    %286 = vmatprep.subr.mxu0 0.0
    %287 = vmatpush1.msra.mxu0 0.0
    %288 = vmatprep.subr.mxu0 0.0
    %289 = vmatpush1.msra.mxu0 0.0
    %290 = vmatprep.mubr.f32.mxu0 0.0
    %291 = vmatmul.mubr.f32.gmra.mrb[0].mxu0 %v153
    %v292 = vpop.f32.mrb[0].mxu0
    %v293 = vadd.f32 0.0, %v292
    %v294 = vpop.f32.mrb[0].mxu0
    %v295 = vadd.f32 0.0, %v294
    %296 = vdwg.mxu0
    %297 = vmatprep.subr.mxu0 %v70
    %298 = vmatpush1.msra.mxu0 %v69
    %299 = vmatprep.subr.mxu0 %v74
    %300 = vmatpush1.msra.mxu0 %v73
    %301 = vmatprep.subr.mxu0 %v78
    %302 = vmatpush1.msra.mxu0 %v77
    %303 = vmatprep.subr.mxu0 %v82
    %304 = vmatpush1.msra.mxu0 %v81
    %305 = vmatprep.subr.mxu0 %v86
    %306 = vmatpush1.msra.mxu0 %v85
    %307 = vmatprep.subr.mxu0 %v90
    %308 = vmatpush1.msra.mxu0 %v89
    %309 = vmatprep.subr.mxu0 %v94
    %310 = vmatpush1.msra.mxu0 %v93
    %311 = vmatprep.subr.mxu0 %v98
    %312 = vmatpush1.msra.mxu0 %v97
    %313 = vmatprep.subr.mxu0 %v102
    %314 = vmatpush1.msra.mxu0 %v101
    %315 = vmatprep.subr.mxu0 %v106
    %316 = vmatpush1.msra.mxu0 %v105
    %317 = vmatprep.subr.mxu0 %v110
    %318 = vmatpush1.msra.mxu0 %v109
    %319 = vmatprep.subr.mxu0 %v114
    %320 = vmatpush1.msra.mxu0 %v113
    %321 = vmatprep.subr.mxu0 %v118
    %322 = vmatpush1.msra.mxu0 %v117
    %323 = vmatprep.subr.mxu0 %v122
    %324 = vmatpush1.msra.mxu0 %v121
    %325 = vmatprep.subr.mxu0 %v126
    %326 = vmatpush1.msra.mxu0 %v125
    %327 = vmatprep.subr.mxu0 %v130
    %328 = vmatpush1.msra.mxu0 %v129
    %329 = vmatprep.subr.mxu0 0.0
    %330 = vmatpush1.msra.mxu0 0.0
    %331 = vmatprep.subr.mxu0 0.0
    %332 = vmatpush1.msra.mxu0 0.0
    %333 = vmatprep.subr.mxu0 0.0
    %334 = vmatpush1.msra.mxu0 0.0
    %335 = vmatprep.subr.mxu0 0.0
    %336 = vmatpush1.msra.mxu0 0.0
    %337 = vmatprep.subr.mxu0 0.0
    %338 = vmatpush1.msra.mxu0 0.0
    %339 = vmatprep.subr.mxu0 0.0
    %340 = vmatpush1.msra.mxu0 0.0
    %341 = vmatprep.subr.mxu0 0.0
    %342 = vmatpush1.msra.mxu0 0.0
    %343 = vmatprep.subr.mxu0 0.0
    %344 = vmatpush1.msra.mxu0 0.0
    %345 = vmatprep.subr.mxu0 0.0
    %346 = vmatpush1.msra.mxu0 0.0
    %347 = vmatprep.subr.mxu0 0.0
    %348 = vmatpush1.msra.mxu0 0.0
    %349 = vmatprep.subr.mxu0 0.0
    %350 = vmatpush1.msra.mxu0 0.0
    %351 = vmatprep.subr.mxu0 0.0
    %352 = vmatpush1.msra.mxu0 0.0
    %353 = vmatprep.subr.mxu0 0.0
    %354 = vmatpush1.msra.mxu0 0.0
    %355 = vmatprep.subr.mxu0 0.0
    %356 = vmatpush1.msra.mxu0 0.0
    %357 = vmatprep.subr.mxu0 0.0
    %358 = vmatpush1.msra.mxu0 0.0
    %359 = vmatprep.subr.mxu0 0.0
    %360 = vmatpush1.msra.mxu0 0.0
    %361 = vmatprep.mubr.f32.mxu0 0.0
    %362 = vmatmul.mubr.f32.gmra.mrb[0].mxu0 %v149
    %v363 = vpop.f32.mrb[0].mxu0
    %v364 = vadd.f32 %v222, %v363
    %v365 = vpop.f32.mrb[0].mxu0
    %v366 = vadd.f32 %v224, %v365
    %367 = vdwg.mxu0
    %368 = vmatprep.subr.mxu0 %v72
    %369 = vmatpush1.msra.mxu0 %v71
    %370 = vmatprep.subr.mxu0 %v76
    %371 = vmatpush1.msra.mxu0 %v75
    %372 = vmatprep.subr.mxu0 %v80
    %373 = vmatpush1.msra.mxu0 %v79
    %374 = vmatprep.subr.mxu0 %v84
    %375 = vmatpush1.msra.mxu0 %v83
    %376 = vmatprep.subr.mxu0 %v88
    %377 = vmatpush1.msra.mxu0 %v87
    %378 = vmatprep.subr.mxu0 %v92
    %379 = vmatpush1.msra.mxu0 %v91
    %380 = vmatprep.subr.mxu0 %v96
    %381 = vmatpush1.msra.mxu0 %v95
    %382 = vmatprep.subr.mxu0 %v100
    %383 = vmatpush1.msra.mxu0 %v99
    %384 = vmatprep.subr.mxu0 %v104
    %385 = vmatpush1.msra.mxu0 %v103
    %386 = vmatprep.subr.mxu0 %v108
    %387 = vmatpush1.msra.mxu0 %v107
    %388 = vmatprep.subr.mxu0 %v112
    %389 = vmatpush1.msra.mxu0 %v111
    %390 = vmatprep.subr.mxu0 %v116
    %391 = vmatpush1.msra.mxu0 %v115
    %392 = vmatprep.subr.mxu0 %v120
    %393 = vmatpush1.msra.mxu0 %v119
    %394 = vmatprep.subr.mxu0 %v124
    %395 = vmatpush1.msra.mxu0 %v123
    %396 = vmatprep.subr.mxu0 %v128
    %397 = vmatpush1.msra.mxu0 %v127
    %398 = vmatprep.subr.mxu0 %v132
    %399 = vmatpush1.msra.mxu0 %v131
    %400 = vmatprep.subr.mxu0 0.0
    %401 = vmatpush1.msra.mxu0 0.0
    %402 = vmatprep.subr.mxu0 0.0
    %403 = vmatpush1.msra.mxu0 0.0
    %404 = vmatprep.subr.mxu0 0.0
    %405 = vmatpush1.msra.mxu0 0.0
    %406 = vmatprep.subr.mxu0 0.0
    %407 = vmatpush1.msra.mxu0 0.0
    %408 = vmatprep.subr.mxu0 0.0
    %409 = vmatpush1.msra.mxu0 0.0
    %410 = vmatprep.subr.mxu0 0.0
    %411 = vmatpush1.msra.mxu0 0.0
    %412 = vmatprep.subr.mxu0 0.0
    %413 = vmatpush1.msra.mxu0 0.0
    %414 = vmatprep.subr.mxu0 0.0
    %415 = vmatpush1.msra.mxu0 0.0
    %416 = vmatprep.subr.mxu0 0.0
    %417 = vmatpush1.msra.mxu0 0.0
    %418 = vmatprep.subr.mxu0 0.0
    %419 = vmatpush1.msra.mxu0 0.0
    %420 = vmatprep.subr.mxu0 0.0
    %421 = vmatpush1.msra.mxu0 0.0
    %422 = vmatprep.subr.mxu0 0.0
    %423 = vmatpush1.msra.mxu0 0.0
    %424 = vmatprep.subr.mxu0 0.0
    %425 = vmatpush1.msra.mxu0 0.0
    %426 = vmatprep.subr.mxu0 0.0
    %427 = vmatpush1.msra.mxu0 0.0
    %428 = vmatprep.subr.mxu0 0.0
    %429 = vmatpush1.msra.mxu0 0.0
    %430 = vmatprep.subr.mxu0 0.0
    %431 = vmatpush1.msra.mxu0 0.0
    %432 = vmatprep.mubr.f32.mxu0 0.0
    %433 = vmatmul.mubr.f32.gmra.mrb[0].mxu0 %v149
    %v434 = vpop.f32.mrb[0].mxu0
    %v435 = vadd.f32 %v293, %v434
    %v436 = vpop.f32.mrb[0].mxu0
    %v437 = vadd.f32 %v295, %v436
    %438 = vdwg.mxu0
    %v439 = vld [vmem:[%s6] sm:$0xf]
    %v441 = vlaneseq
    %v442 = vshrl.u32 %v441, 7
    %v443 = vsub.s32 0, %v442
    %v444 = vrot.slane %v439, %v443
    %v445 = vlaneseq
    %v446 = vshrl.u32 %v445, 7
    %v447 = vsub.s32 1, %v446
    %v448 = vrot.slane %v439, %v447
    %v449 = vlaneseq
    %v450 = vshrl.u32 %v449, 7
    %v451 = vsub.s32 2, %v450
    %v452 = vrot.slane %v439, %v451
    %v453 = vlaneseq
    %v454 = vshrl.u32 %v453, 7
    %v455 = vsub.s32 3, %v454
    %v456 = vrot.slane %v439, %v455
    %v461 = vadd.f32 %v364, %v444
    %v462 = vadd.f32 %v366, %v448
    %v463 = vadd.f32 %v435, %v452
    %v464 = vadd.f32 %v437, %v456
    %v465 = vld [vmem:[%s3] sm:$0xff]
    %v466 = vld [vmem:[%s2] sm:$0xff]
    %v467 = vxor.u32 %v461, 2147483648
    %v468 = vxor.u32 %v462, 2147483648
    %v469 = vxor.u32 %v463, 2147483648
    %v470 = vmul.f32 %v467, 1.442695
    %v471 = vpow.pop %v470
    %v472 = vmul.f32 %v468, 1.442695
    %v473 = vpow.pop %v472
    %v474 = vmul.f32 %v469, 1.442695
    %v475 = vpow.pop %v474
    %v476 = vadd.f32 %v471, 1.0
    %v477 = vadd.f32 %v473, 1.0
    %v478 = vadd.f32 %v475, 1.0
    %v479 = vrcp.pop %v476
    %v480 = vmul.f32 1.0, %v479
    %v481 = vrcp.pop %v477
    %v482 = vmul.f32 1.0, %v481
    %v483 = vrcp.pop %v478
    %v484 = vmul.f32 1.0, %v483
    %v485 = vtanh.pop %v464
    %487 = vset.pattern.permute.xlu0 0
    %488 = vperm.xlu0 %487, %v465
    %v489 = vpop.permute.xlu0 %488
    %v491 = vadd.f32 %v489, 1.0
    %v492 = vmul.f32 %v482, %v491
    %v493 = vmul.f32 %v492, %v466
    %v494 = vmul.f32 %v480, %v489
    %v495 = vmul.f32 %v494, %v485
    %v496 = vadd.f32 %v493, %v495
    %v497 = vtanh.pop %v496
    %v498 = vmul.f32 %v484, %v497
    %499 = vst.msk [vmem:[#allocation8] sm:$0xff] %vm151, %v498
    %500 = vst.msk [vmem:[#allocation9] sm:$0xff] %vm151, %v496
    // Predicated region
    $region42: #{tpu_custom_call.1} parent=1 // pred_check
      _
    $region43: #{tpu_custom_call.1} parent=1 // pred_check_branch
      %502 = sbr.rel (0) target = $region45
    $region44: #{tpu_custom_call.1} parent=1 // pred_region
      %s504 = ssub.s32 128, 128
      %505 = vsyncadd [#allocation4], %s504
      %s507 = sshll.u32 [#allocation8], 4
      %s508 = int_to_ptr.vmem [resolvable:$true] %s507
      %510 = dma.vmem_to_hbm [thread:$0]  %s508, 128, %s7, [#allocation4]
    $region45: #{tpu_custom_call.1} parent=1 // pred_fallthru
      _
    // Predicated region
    $region46: #{tpu_custom_call.1} parent=1 // pred_check
      _
    $region47: #{tpu_custom_call.1} parent=1 // pred_check_branch
      %512 = sbr.rel (0) target = $region49
    $region48: #{tpu_custom_call.1} parent=1 // pred_region
      %s514 = ssub.s32 128, 128
      %515 = vsyncadd [#allocation10], %s514
      %s517 = sshll.u32 [#allocation9], 4
      %s518 = int_to_ptr.vmem [resolvable:$true] %s517
      %520 = dma.vmem_to_hbm [thread:$0]  %s518, 128, %s8, [#allocation10]
    $region49: #{tpu_custom_call.1} parent=1 // pred_fallthru
      _
    // Predicated region
    $region50: #{tpu_custom_call.1} parent=1 // pred_check
      _
    $region51: #{tpu_custom_call.1} parent=1 // pred_check_branch
      %522 = sbr.rel (0) target = $region53
    $region52: #{tpu_custom_call.1} parent=1 // pred_region
      %523 = dma.done [#allocation4], 128
    $region53: #{tpu_custom_call.1} parent=1 // pred_fallthru
      _
    // Predicated region
    $region54: #{tpu_custom_call.1} parent=1 // pred_check
      _
    $region55: #{tpu_custom_call.1} parent=1 // pred_check_branch
      %525 = sbr.rel (0) target = $region57
    $region56: #{tpu_custom_call.1} parent=1 // pred_region
      %526 = dma.done [#allocation10], 128
    $region57: #{tpu_custom_call.1} parent=1 // pred_fallthru
      _
    %527 = vsyncpa [#allocation3], 1
    %528 = vsyncpa [#allocation6], 1
    %529 = vsyncpa [#allocation4], 1
    %530 = vsyncpa [#allocation10], 1

</llo_original>
